<compile_context>
chip_gen: v5e
topology: v5e:2x2
jax: 0.10.0
libtpu: 0.0.40
codegen_flags: <defaults>
</compile_context>

<pallas_src>
import functools

import jax
import jax.numpy as jnp
from jax.experimental import pallas as pl
from jax.experimental.pallas import tpu as pltpu


def _gru_linear_kernel(x_ref, h_ref, wx_ref, wh_ref, b_ref, o_ref, *,
                       compute_dtype, activation):
    # x_ref : (TM, F)  h_ref : (TM, H)   native input dtype (f32 here)
    # wx_ref: (F, O)   wh_ref: (H, O)    compute_dtype, VMEM-resident
    # b_ref : (1, O)   f32
    # o_ref : (TM, O)  out_dtype
    x = x_ref[...].astype(compute_dtype)   # cast on the VPU, hidden under DMA
    h = h_ref[...].astype(compute_dtype)
    acc = jnp.dot(x, wx_ref[...], preferred_element_type=jnp.float32)
    acc = acc + jnp.dot(h, wh_ref[...], preferred_element_type=jnp.float32)
    acc = acc + b_ref[...]
    if activation == "sigmoid":
        acc = jax.nn.sigmoid(acc)          # EUP; free under the HBM bottleneck
    elif activation == "tanh":
        acc = jnp.tanh(acc)
    o_ref[...] = acc.astype(o_ref.dtype)


def gru_linear(inputs, hidden_state, weights, biases, *, num_nodes, num_gru_units,
               feature_num, output_dim, block_m=2048,
               compute_dtype=jnp.bfloat16, out_dtype=jnp.float32,
               activation=None):
    """Pallas implementation of GRULinear.forward.

    inputs:       (B, num_nodes * feature_num)       float32
    hidden_state: (B, num_nodes * num_gru_units)     float32
    weights:      (num_gru_units + feature_num, output_dim)
    biases:       (output_dim,)
    returns:      (B, num_nodes, output_dim)         out_dtype
    """
    batch_size = hidden_state.shape[0]
    m = batch_size * num_nodes
    k = feature_num + num_gru_units

    # Keep activations in their native dtype; any down-cast happens in-kernel.
    x = inputs.reshape(m, feature_num)
    h = hidden_state.reshape(m, num_gru_units)

    # Split the concat-weight: concat([x, h]) @ W == x @ W[:F] + h @ W[F:].
    # Weights are a few KiB -> cast once in the wrapper, stay resident in VMEM.
    wx = weights[:feature_num, :].astype(compute_dtype)
    wh = weights[feature_num:, :].astype(compute_dtype)
    b2d = biases.reshape(1, output_dim).astype(jnp.float32)

    # M tile: multiple of 8 (or full M when tiny).  Targets:
    #   - big enough (~2K rows) to amortize per-grid-step pipeline overhead,
    #   - >= 2 grid steps on moderate M so the "parallel" axis shards across
    #     v7x's 2 TensorCores,
    #   - double-buffered footprint well under scoped-VMEM defaults
    #     (v5e 16 MiB / v6e 32 MiB / v7x 32 MiB of 64 MiB-per-TC physical).
    if m <= 8:
        tm = m
    else:
        half = ((-(-m // 2)) + 7) // 8 * 8          # ceil(m/2), rounded up to /8
        tm = min(block_m, half)
    grid = (pl.cdiv(m, tm),)

    w_bytes = jnp.dtype(compute_dtype).itemsize
    out_bytes = jnp.dtype(out_dtype).itemsize
    cost = pl.CostEstimate(
        flops=2 * m * k * output_dim,
        transcendentals=(m * output_dim if activation in ("sigmoid", "tanh") else 0),
        bytes_accessed=(m * feature_num * x.dtype.itemsize      # x read (native)
                        + m * num_gru_units * h.dtype.itemsize  # h read (native)
                        + k * output_dim * w_bytes              # weights
                        + output_dim * 4                        # bias
                        + m * output_dim * out_bytes),          # output write
    )

    kernel = functools.partial(_gru_linear_kernel,
                               compute_dtype=compute_dtype,
                               activation=activation)

    out = pl.pallas_call(
        kernel,
        out_shape=jax.ShapeDtypeStruct((m, output_dim), out_dtype),
        grid_spec=pltpu.PrefetchScalarGridSpec(
            num_scalar_prefetch=0,
            grid=grid,
            in_specs=[
                pl.BlockSpec((tm, feature_num), lambda i: (i, 0)),
                pl.BlockSpec((tm, num_gru_units), lambda i: (i, 0)),
                # Weights/bias: constant block index -> stay resident in VMEM.
                pl.BlockSpec((feature_num, output_dim), lambda i: (0, 0)),
                pl.BlockSpec((num_gru_units, output_dim), lambda i: (0, 0)),
                pl.BlockSpec((1, output_dim), lambda i: (0, 0)),
            ],
            out_specs=pl.BlockSpec((tm, output_dim), lambda i: (i, 0)),
        ),
        compiler_params=pltpu.CompilerParams(
            dimension_semantics=("parallel",)),
        cost_estimate=cost,
    )(x, h, wx, wh, b2d)

    return out.reshape(batch_size, num_nodes, output_dim)


def init_params(key, num_gru_units, output_dim, feature_num, bias_init=0.0):
    """Deterministic Xavier-uniform weights + constant bias, matching reset_parameters."""
    k_in = num_gru_units + feature_num
    bound = jnp.sqrt(6.0 / (k_in + output_dim))
    weights = jax.random.uniform(key, (k_in, output_dim), jnp.float32,
                                 minval=-bound, maxval=bound)
    biases = jnp.full((output_dim,), bias_init, dtype=jnp.float32)
    return weights, biases


if __name__ == "__main__":
    # Small shapes consistent with the module's forward.
    batch = 2
    num_nodes = 16
    feature_num = 4
    num_gru_units = 32
    output_dim = 8

    key = jax.random.PRNGKey(0)
    k_w, k_x, k_h = jax.random.split(key, 3)

    weights, biases = init_params(k_w, num_gru_units, output_dim, feature_num,
                                  bias_init=0.0)

    inputs = jax.random.normal(k_x, (batch, num_nodes * feature_num), jnp.float32)
    hidden_state = jax.random.normal(k_h, (batch, num_nodes * num_gru_units),
                                     jnp.float32)

    fn = jax.jit(functools.partial(
        gru_linear,
        num_nodes=num_nodes, num_gru_units=num_gru_units,
        feature_num=feature_num, output_dim=output_dim))

    out = fn(inputs, hidden_state, weights, biases)
    out = jax.block_until_ready(out)

    # Reference in plain JAX (same math as the PyTorch forward, f32).
    x3 = inputs.reshape(batch, num_nodes, feature_num)
    h3 = hidden_state.reshape(batch, num_nodes, num_gru_units)
    concat = jnp.concatenate([x3, h3], axis=2)
    ref = concat @ weights + biases

    assert out.shape == (batch, num_nodes, output_dim)
    # bf16 in-kernel compute / f32 accumulation -> looser tolerance vs f32 ref.
    assert jnp.allclose(out, ref, atol=5e-2, rtol=5e-2), \
        float(jnp.max(jnp.abs(out - ref)))

    # Exact-math path (f32 compute) must match tightly.
    out_f32 = jax.block_until_ready(
        gru_linear(inputs, hidden_state, weights, biases,
                   num_nodes=num_nodes, num_gru_units=num_gru_units,
                   feature_num=feature_num, output_dim=output_dim,
                   compute_dtype=jnp.float32))
    assert jnp.allclose(out_f32, ref, atol=1e-5, rtol=1e-5)

    # Fused-epilogue path (GRU gate call): sigmoid applied in-kernel on the EUP.
    out_gate = jax.block_until_ready(
        gru_linear(inputs, hidden_state, weights, biases,
                   num_nodes=num_nodes, num_gru_units=num_gru_units,
                   feature_num=feature_num, output_dim=output_dim,
                   compute_dtype=jnp.float32, activation="sigmoid"))
    assert jnp.allclose(out_gate, jax.nn.sigmoid(ref), atol=1e-5, rtol=1e-5)

    print("KERNEL_OK")
</pallas_src>

<mosaic_0001>
module attributes {stable_mosaic.version = 11 : i64} {
  func.func @_gru_linear_kernel(%arg0: i32, %arg1: memref<16x4xf32, #tpu.memory_space<vmem>>, %arg2: memref<16x32xf32, #tpu.memory_space<vmem>>, %arg3: memref<4x8xbf16, #tpu.memory_space<vmem>>, %arg4: memref<32x8xbf16, #tpu.memory_space<vmem>>, %arg5: memref<1x8xf32, #tpu.memory_space<vmem>>, %arg6: memref<16x8xf32, #tpu.memory_space<vmem>>) attributes {dimension_semantics = [#tpu.dimension_semantics<parallel>], iteration_bounds = array<i64: 2>, scalar_prefetch = 0 : i64, scratch_operands = 0 : i64, tpu.core_type = #tpu.core_type<tc>, window_params = [{transform_indices = @transform_0, window_bounds = array<i64: 16, 4>}, {transform_indices = @transform_1, window_bounds = array<i64: 16, 32>}, {pipeline_mode = #tpu.pipeline_mode<synchronous>, transform_indices = @transform_2, window_bounds = array<i64: 4, 8>}, {pipeline_mode = #tpu.pipeline_mode<synchronous>, transform_indices = @transform_3, window_bounds = array<i64: 32, 8>}, {pipeline_mode = #tpu.pipeline_mode<synchronous>, transform_indices = @transform_4, window_bounds = array<i64: 1, 8>}, {transform_indices = @transform_5, window_bounds = array<i64: 16, 8>}]} {
    %c0 = arith.constant 0 : index
    %c0_0 = arith.constant 0 : index
    %0 = vector.load %arg1[%c0, %c0_0] : memref<16x4xf32, #tpu.memory_space<vmem>>, vector<16x4xf32>
    %1 = arith.truncf %0 : vector<16x4xf32> to vector<16x4xbf16>
    %c0_1 = arith.constant 0 : index
    %c0_2 = arith.constant 0 : index
    %2 = vector.load %arg2[%c0_1, %c0_2] : memref<16x32xf32, #tpu.memory_space<vmem>>, vector<16x32xf32>
    %3 = arith.truncf %2 : vector<16x32xf32> to vector<16x32xbf16>
    %c0_3 = arith.constant 0 : index
    %c0_4 = arith.constant 0 : index
    %4 = vector.load %arg3[%c0_3, %c0_4] : memref<4x8xbf16, #tpu.memory_space<vmem>>, vector<4x8xbf16>
    %cst = arith.constant dense<0.000000e+00> : vector<16x8xf32>
    %5 = tpu.matmul %1, %4, %cst {dimension_numbers = #tpu.dot_dimension_numbers<[1], [0], [0], [1], [0, 0, 1, 1], [], []>} : vector<16x4xbf16>, vector<4x8xbf16>, vector<16x8xf32> -> vector<16x8xf32>
    %c0_5 = arith.constant 0 : index
    %c0_6 = arith.constant 0 : index
    %6 = vector.load %arg4[%c0_5, %c0_6] : memref<32x8xbf16, #tpu.memory_space<vmem>>, vector<32x8xbf16>
    %cst_7 = arith.constant dense<0.000000e+00> : vector<16x8xf32>
    %7 = tpu.matmul %3, %6, %cst_7 {dimension_numbers = #tpu.dot_dimension_numbers<[1], [0], [0], [1], [0, 0, 1, 1], [], []>} : vector<16x32xbf16>, vector<32x8xbf16>, vector<16x8xf32> -> vector<16x8xf32>
    %8 = arith.addf %5, %7 : vector<16x8xf32>
    %c0_8 = arith.constant 0 : index
    %c0_9 = arith.constant 0 : index
    %9 = vector.load %arg5[%c0_8, %c0_9] : memref<1x8xf32, #tpu.memory_space<vmem>>, vector<1x8xf32>
    %10 = vector.broadcast %9 : vector<1x8xf32> to vector<16x8xf32>
    %11 = arith.addf %8, %10 : vector<16x8xf32>
    %c0_10 = arith.constant 0 : index
    %c0_11 = arith.constant 0 : index
    %12 = vector.load %arg6[%c0_10, %c0_11] : memref<16x8xf32, #tpu.memory_space<vmem>>, vector<16x8xf32>
    tpu.vector_store %arg6[%c0_10, %c0_11], %11 {strides = array<i32>} : memref<16x8xf32, #tpu.memory_space<vmem>>, vector<16x8xf32>,
    return
  }
  func.func @transform_0(%arg0: i32) -> (i32, i32) {
    %c0_i32 = arith.constant 0 : i32
    %c0_i32_0 = arith.constant 0 : i32
    return %arg0, %c0_i32 : i32, i32
  }
  func.func @transform_1(%arg0: i32) -> (i32, i32) {
    %c0_i32 = arith.constant 0 : i32
    %c0_i32_0 = arith.constant 0 : i32
    return %arg0, %c0_i32 : i32, i32
  }
  func.func @transform_2(%arg0: i32) -> (i32, i32) {
    %c0_i32 = arith.constant 0 : i32
    %c0_i32_0 = arith.constant 0 : i32
    %c0_i32_1 = arith.constant 0 : i32
    return %c0_i32, %c0_i32_0 : i32, i32
  }
  func.func @transform_3(%arg0: i32) -> (i32, i32) {
    %c0_i32 = arith.constant 0 : i32
    %c0_i32_0 = arith.constant 0 : i32
    %c0_i32_1 = arith.constant 0 : i32
    return %c0_i32, %c0_i32_0 : i32, i32
  }
  func.func @transform_4(%arg0: i32) -> (i32, i32) {
    %c0_i32 = arith.constant 0 : i32
    %c0_i32_0 = arith.constant 0 : i32
    %c0_i32_1 = arith.constant 0 : i32
    return %c0_i32, %c0_i32_0 : i32, i32
  }
  func.func @transform_5(%arg0: i32) -> (i32, i32) {
    %c0_i32 = arith.constant 0 : i32
    %c0_i32_0 = arith.constant 0 : i32
    return %arg0, %c0_i32 : i32, i32
  }
}

</mosaic_0001>

<llo_original>
// kernel: gru_linear.1
$region0: #{gru_linear.1}
  #allocation0 [shape = 'u32[]', space=smem, size = 0x4, offset = 0x4, fixed_abs, tag = 'smem constant byte address 0x4 - core index']
  #allocation1 [shape = 'u32[72,128]{1,0:T(1,128)}', space=vmem, size = 0x9000, scoped, tag = 'internal scratch']
  %s0 = inlined_call_operand.vmem [shape: f32[32,4], index: 0, kind: input, shape index: {}]
  %s1 = inlined_call_operand.vmem [shape: f32[32,32], index: 1, kind: input, shape index: {}]
  %s2 = inlined_call_operand.vmem [shape: bf16[4,8], index: 2, kind: input, shape index: {}]
  %s3 = inlined_call_operand.vmem [shape: bf16[32,8], index: 3, kind: input, shape index: {}]
  %s4 = inlined_call_operand.vmem [shape: f32[1,8], index: 4, kind: input, shape index: {}]
  %s5 = inlined_call_operand.vmem [shape: f32[32,8], index: 5, kind: output, shape index: {}]
  %s6 = sld [smem:[#allocation0]]
  $region53: #{gru_linear.1} parent=0
    _
  %s8 = ssub.s32 1, %s6
  %s9 = scalar_select 0, %s8, %s6
  loop: start=0, step=1, limit=4
  $region2: #{gru_linear.1} parent=0 // loop_pre_header
    _
  $region3: #{gru_linear.1} parent=0 // loop_header
    %s11 = sphi 0, %s15
    %p12 = scmp.ge.s32.totalorder %s11, 4
    %s21 = sphi 0, %s23
    %s24 = sphi 0, %s21
    %s25 = sphi 0, %s24
    %s41 = sphi 0, %s25
    %s47 = sphi 0, %s49
    %s50 = sphi 0, %s47
    %s51 = sphi 0, %s50
    %s67 = sphi 0, %s51
    %s71 = sphi 0, %s71
    %s73 = sphi 0, %s71
    %s74 = sphi 0, %s73
    %s88 = sphi 0, %s74
    %s92 = sphi 0, %s92
    %s94 = sphi 0, %s92
    %s95 = sphi 0, %s94
    %s109 = sphi 0, %s95
    %s113 = sphi 0, %s113
    %s115 = sphi 0, %s113
    %s116 = sphi 0, %s115
    %s130 = sphi 0, %s116
    %s136 = sphi 0, %s138
    %s139 = sphi 0, %s136
    %s140 = sphi 0, %s139
    %s156 = sphi 0, %s140
  $region4: #{gru_linear.1} parent=0 // loop_header_branch
    %14 = sbr.rel (%p12) target = $region8
  $region5: #{gru_linear.1} parent=0 // loop_body
    %s16 = ssub.s32 %s11, 1
    %s17 = ssub.s32 %s11, 2
    %s18 = sadd.s32 %s11, 1
    %s19 = ssub.s32 %s11, %s18
    %p20 = scmp.eq.s32.totalorder %s19, 0
    %s22 = sadd.s32 %s21, 1
    %s23 = scalar_select %p20, %s21, %s22
    %p26 = pneg %p20
    %p27 = scmp.eq.s32.totalorder %s11, 1
    %p28 = por %p26, %p27
    %p29 = scmp.ne.s32.totalorder %s21, %s24
    %p30 = scmp.eq.s32.totalorder %s11, 0
    %p31 = por %p29, %p30
    %p32 = scmp.ne.s32.totalorder %s21, %s24
    %p33 = scmp.eq.s32.totalorder %s16, 1
    %p34 = por %p32, %p33
    %p35 = scmp.ne.s32.totalorder %s24, %s25
    %p36 = scmp.eq.s32.totalorder %s16, 0
    %p37 = por %p35, %p36
    %p38 = scmp.ne.s32.totalorder %s24, %s25
    %p39 = scmp.eq.s32.totalorder %s17, 1
    %p40 = por %p38, %p39
    %p42 = scmp.ne.s32.totalorder %s25, %s41
    %p43 = scmp.eq.s32.totalorder %s17, 0
    %p44 = por %p42, %p43
    %s45 = ssub.s32 %s11, %s18
    %p46 = scmp.eq.s32.totalorder %s45, 0
    %s48 = sadd.s32 %s47, 1
    %s49 = scalar_select %p46, %s47, %s48
    %p52 = pneg %p46
    %p53 = scmp.eq.s32.totalorder %s11, 1
    %p54 = por %p52, %p53
    %p55 = scmp.ne.s32.totalorder %s47, %s50
    %p56 = scmp.eq.s32.totalorder %s11, 0
    %p57 = por %p55, %p56
    %p58 = scmp.ne.s32.totalorder %s47, %s50
    %p59 = scmp.eq.s32.totalorder %s16, 1
    %p60 = por %p58, %p59
    %p61 = scmp.ne.s32.totalorder %s50, %s51
    %p62 = scmp.eq.s32.totalorder %s16, 0
    %p63 = por %p61, %p62
    %p64 = scmp.ne.s32.totalorder %s50, %s51
    %p65 = scmp.eq.s32.totalorder %s17, 1
    %p66 = por %p64, %p65
    %p68 = scmp.ne.s32.totalorder %s51, %s67
    %p69 = scmp.eq.s32.totalorder %s17, 0
    %p70 = por %p68, %p69
    %s72 = sadd.s32 %s71, 1
    %p75 = scmp.eq.s32.totalorder %s11, 1
    %p76 = scmp.ne.s32.totalorder %s71, %s73
    %p77 = scmp.eq.s32.totalorder %s11, 0
    %p78 = por %p76, %p77
    %p79 = scmp.ne.s32.totalorder %s71, %s73
    %p80 = scmp.eq.s32.totalorder %s16, 1
    %p81 = por %p79, %p80
    %p82 = scmp.ne.s32.totalorder %s73, %s74
    %p83 = scmp.eq.s32.totalorder %s16, 0
    %p84 = por %p82, %p83
    %p85 = scmp.ne.s32.totalorder %s73, %s74
    %p86 = scmp.eq.s32.totalorder %s17, 1
    %p87 = por %p85, %p86
    %p89 = scmp.ne.s32.totalorder %s74, %s88
    %p90 = scmp.eq.s32.totalorder %s17, 0
    %p91 = por %p89, %p90
    %s93 = sadd.s32 %s92, 1
    %p96 = scmp.eq.s32.totalorder %s11, 1
    %p97 = scmp.ne.s32.totalorder %s92, %s94
    %p98 = scmp.eq.s32.totalorder %s11, 0
    %p99 = por %p97, %p98
    %p100 = scmp.ne.s32.totalorder %s92, %s94
    %p101 = scmp.eq.s32.totalorder %s16, 1
    %p102 = por %p100, %p101
    %p103 = scmp.ne.s32.totalorder %s94, %s95
    %p104 = scmp.eq.s32.totalorder %s16, 0
    %p105 = por %p103, %p104
    %p106 = scmp.ne.s32.totalorder %s94, %s95
    %p107 = scmp.eq.s32.totalorder %s17, 1
    %p108 = por %p106, %p107
    %p110 = scmp.ne.s32.totalorder %s95, %s109
    %p111 = scmp.eq.s32.totalorder %s17, 0
    %p112 = por %p110, %p111
    %s114 = sadd.s32 %s113, 1
    %p117 = scmp.eq.s32.totalorder %s11, 1
    %p118 = scmp.ne.s32.totalorder %s113, %s115
    %p119 = scmp.eq.s32.totalorder %s11, 0
    %p120 = por %p118, %p119
    %p121 = scmp.ne.s32.totalorder %s113, %s115
    %p122 = scmp.eq.s32.totalorder %s16, 1
    %p123 = por %p121, %p122
    %p124 = scmp.ne.s32.totalorder %s115, %s116
    %p125 = scmp.eq.s32.totalorder %s16, 0
    %p126 = por %p124, %p125
    %p127 = scmp.ne.s32.totalorder %s115, %s116
    %p128 = scmp.eq.s32.totalorder %s17, 1
    %p129 = por %p127, %p128
    %p131 = scmp.ne.s32.totalorder %s116, %s130
    %p132 = scmp.eq.s32.totalorder %s17, 0
    %p133 = por %p131, %p132
    %s134 = ssub.s32 %s11, %s18
    %p135 = scmp.eq.s32.totalorder %s134, 0
    %s137 = sadd.s32 %s136, 1
    %s138 = scalar_select %p135, %s136, %s137
    %p141 = pneg %p135
    %p142 = scmp.eq.s32.totalorder %s11, 1
    %p143 = por %p141, %p142
    %p144 = scmp.ne.s32.totalorder %s136, %s139
    %p145 = scmp.eq.s32.totalorder %s11, 0
    %p146 = por %p144, %p145
    %p147 = scmp.ne.s32.totalorder %s136, %s139
    %p148 = scmp.eq.s32.totalorder %s16, 1
    %p149 = por %p147, %p148
    %p150 = scmp.ne.s32.totalorder %s139, %s140
    %p151 = scmp.eq.s32.totalorder %s16, 0
    %p152 = por %p150, %p151
    %p153 = scmp.ne.s32.totalorder %s139, %s140
    %p154 = scmp.eq.s32.totalorder %s17, 1
    %p155 = por %p153, %p154
    %p157 = scmp.ne.s32.totalorder %s140, %s156
    %p158 = scmp.eq.s32.totalorder %s17, 0
    %p159 = por %p157, %p158
    %p160 = scmp.le.s32.totalorder 1, %s11
    %p161 = scmp.lt.s32.totalorder %s11, 3
    %p162 = pnand %p160, %p161
    %p163 = pneg %p162
    // Predicated region
    $region9: #{gru_linear.1} parent=5 // pred_check
      _
    $region10: #{gru_linear.1} parent=5 // pred_check_branch
      %165 = sbr.rel (%p162) target = $region12
    $region11: #{gru_linear.1} parent=5 // pred_region
      %s166 = ssub.s32 %s11, 1
      // Predicated region
      $region13: #{gru_linear.1} parent=11 // pred_check
        %p167 = pneg %p84
      $region14: #{gru_linear.1} parent=11 // pred_check_branch
        %169 = sbr.rel (%p167) target = $region16
      $region15: #{gru_linear.1} parent=11 // pred_region
        _
      $region16: #{gru_linear.1} parent=11 // pred_fallthru
        _
      // Predicated region
      $region17: #{gru_linear.1} parent=11 // pred_check
        %p170 = pneg %p105
      $region18: #{gru_linear.1} parent=11 // pred_check_branch
        %172 = sbr.rel (%p170) target = $region20
      $region19: #{gru_linear.1} parent=11 // pred_region
        _
      $region20: #{gru_linear.1} parent=11 // pred_fallthru
        _
      // Predicated region
      $region21: #{gru_linear.1} parent=11 // pred_check
        %p173 = pneg %p126
      $region22: #{gru_linear.1} parent=11 // pred_check_branch
        %175 = sbr.rel (%p173) target = $region24
      $region23: #{gru_linear.1} parent=11 // pred_region
        _
      $region24: #{gru_linear.1} parent=11 // pred_fallthru
        _
    $region12: #{gru_linear.1} parent=5 // pred_fallthru
      _
    %p176 = scmp.lt.s32.totalorder %s11, 2
    // Predicated region
    $region25: #{gru_linear.1} parent=5 // pred_check
      %p177 = pneg %p176
    $region26: #{gru_linear.1} parent=5 // pred_check_branch
      %179 = sbr.rel (%p177) target = $region28
    $region27: #{gru_linear.1} parent=5 // pred_region
      // Predicated region
      $region29: #{gru_linear.1} parent=27 // pred_check
        %p180 = pneg %p31
      $region30: #{gru_linear.1} parent=27 // pred_check_branch
        %182 = sbr.rel (%p180) target = $region32
      $region31: #{gru_linear.1} parent=27 // pred_region
        %s183 = smul.u32 2, %s11
        %p184 = scmp.lt.s32.totalorder %s183, 3
        %s185 = scalar_select %p184, %s183, 3
        %s186 = smul.addr %s185, 8
        %s187 = scalar_lea.vmem %s0, %s186
        %s188 = smul.u32 2, %s11
      $region32: #{gru_linear.1} parent=27 // pred_fallthru
        _
      // Predicated region
      $region33: #{gru_linear.1} parent=27 // pred_check
        %p189 = pneg %p57
      $region34: #{gru_linear.1} parent=27 // pred_check_branch
        %191 = sbr.rel (%p189) target = $region36
      $region35: #{gru_linear.1} parent=27 // pred_region
        %s192 = smul.u32 2, %s11
        %p193 = scmp.lt.s32.totalorder %s192, 3
        %s194 = scalar_select %p193, %s192, 3
        %s195 = smul.addr %s194, 8
        %s196 = scalar_lea.vmem %s1, %s195
        %s197 = smul.u32 2, %s11
      $region36: #{gru_linear.1} parent=27 // pred_fallthru
        _
    $region28: #{gru_linear.1} parent=5 // pred_fallthru
      _
    %p198 = scmp.le.s32.totalorder 1, %s11
    %p199 = scmp.lt.s32.totalorder %s11, 3
    %p200 = pnand %p198, %p199
    %p201 = pneg %p200
    // Predicated region
    $region37: #{gru_linear.1} parent=5 // pred_check
      _
    $region38: #{gru_linear.1} parent=5 // pred_check_branch
      %203 = sbr.rel (%p200) target = $region40
    $region39: #{gru_linear.1} parent=5 // pred_region
      %s204 = ssub.s32 %s11, 1
      %s205 = smul.u32 2, %s16
      %p206 = scmp.lt.s32.totalorder %s205, 3
      %s207 = scalar_select %p206, %s205, 3
      %s208 = smul.addr %s207, 8
      %s209 = scalar_lea.vmem %s0, %s208
      %p210 = pneg %p37
      %p211 = pneg %p34
      %s212 = smul.u32 2, %s16
      %p213 = scmp.lt.s32.totalorder %s212, 3
      %s214 = scalar_select %p213, %s212, 3
      %s215 = smul.addr %s214, 8
      %s216 = scalar_lea.vmem %s1, %s215
      %p217 = pneg %p63
      %p218 = pneg %p60
      %p219 = pneg %p84
      %p220 = pneg %p81
      %p221 = pneg %p105
      %p222 = pneg %p102
      %p223 = pneg %p126
      %p224 = pneg %p123
      %p225 = pneg %p152
      %p226 = pneg %p149
      %s227 = smul.u32 2, %s16
      %p228 = scmp.lt.s32.totalorder %s227, 3
      %s229 = scalar_select %p228, %s227, 3
      %s230 = smul.addr %s229, 8
      %s231 = scalar_lea.vmem %s5, %s230
      %s232 = smul.u32 2, %s16
      %p233 = scmp.lt.s32.totalorder %s232, 3
      %s234 = scalar_select %p233, %s232, 3
      %s235 = smul.addr %s234, 8
      %s236 = scalar_lea.vmem %s0, %s235
      %s237 = smul.u32 2, %s16
      %s238 = smul.u32 2, %s16
      %p239 = scmp.lt.s32.totalorder %s238, 3
      %s240 = scalar_select %p239, %s238, 3
      %s241 = smul.addr %s240, 8
      %s242 = scalar_lea.vmem %s1, %s241
      %s243 = smul.u32 2, %s16
      %s244 = smul.u32 2, %s16
      %p245 = scmp.lt.s32.totalorder %s244, 3
      %s246 = scalar_select %p245, %s244, 3
      %s247 = smul.addr %s246, 8
      %s248 = scalar_lea.vmem %s5, %s247
      %s249 = smul.u32 2, %s16
      %v251 = vld [vmem:[%s236] sm:$0xff]
      %v252 = vld [vmem:[%s236 + $0x8] sm:$0xff]
      %v253 = vpack.c.bf16 %v252, %v251
      %v254 = vld [vmem:[%s242] sm:$0xff]
      %v255 = vld [vmem:[%s242 + $0x8] sm:$0xff]
      %v256 = vpack.c.bf16 %v255, %v254
      %v257 = vld [vmem:[%s2] sm:$0x3]
      %v258 = vld [vmem:[%s3] sm:$0xf]
      %v259 = vld [vmem:[%s3 + $0x4] sm:$0xf]
      %v260 = vld [vmem:[%s3 + $0x8] sm:$0xf]
      %v261 = vld [vmem:[%s3 + $0xc] sm:$0xf]
      %v266 = vunpack.c.l.b16 %v258
      %v267 = vunpack.c.l.b16 %v259
      %v268 = vunpack.c.l.b16 %v260
      %v269 = vunpack.c.l.b16 %v261
      %v270 = vpack.c.b16 %v267, %v266
      %v271 = vpack.c.b16 %v269, %v268
      %vm274 = vcmask 261120
      %v276 = vsel %vm274, %v256, 0
      %278 = vmatpush.bf16.msra.mxu0 0
      %279 = vmatpush.bf16.msra.mxu0 0
      %280 = vmatpush.bf16.msra.mxu0 0
      %281 = vmatpush.bf16.msra.mxu0 0
      %282 = vmatpush.bf16.msra.mxu0 0
      %283 = vmatpush.bf16.msra.mxu0 0
      %284 = vmatpush.bf16.msra.mxu0 %v271
      %285 = vmatpush.bf16.msra.mxu0 %v270
      %286 = vmatmul.bf16.gmra.mxu0 %v276
      %v287 = vpop.f32.mrf.mxu0
      %v288 = vadd.f32 0.0, %v287
      %v289 = vpop.f32.mrf.mxu0
      %v290 = vadd.f32 0.0, %v289
      %291 = vdwg.mxu0
      %vm292 = vcmask 31744
      %v294 = vsel %vm292, %v253, 0
      %vm296 = vcmask 1041408
      %v298 = vsel %vm296, %v257, 0
      %300 = vmatpush.bf16.msra.mxu0 0
      %301 = vmatpush.bf16.msra.mxu0 0
      %302 = vmatpush.bf16.msra.mxu0 0
      %303 = vmatpush.bf16.msra.mxu0 0
      %304 = vmatpush.bf16.msra.mxu0 0
      %305 = vmatpush.bf16.msra.mxu0 0
      %306 = vmatpush.bf16.msra.mxu0 0
      %307 = vmatpush.bf16.msra.mxu0 %v298
      %308 = vmatmul.bf16.gmra.mxu0 %v294
      %v309 = vpop.f32.mrf.mxu0
      %v310 = vadd.f32 %v288, %v309
      %v311 = vpop.f32.mrf.mxu0
      %v312 = vadd.f32 %v290, %v311
      %313 = vdwg.mxu0
      %v314 = vld [vmem:[%s4] sm:$0x1]
      %v316 = vperm.slane %v314, 0
      %v318 = vadd.f32 %v310, %v316
      %v319 = vadd.f32 %v312, %v316
      %vm320 = vcmask 64512
      %321 = vst.msk [vmem:[%s248] sm:$0xff] %vm320, %v318
      %322 = vst.msk [vmem:[%s248 + $0x8] sm:$0xff] %vm320, %v319
      %s323 = smul.u32 2, %s16
      %p324 = scmp.lt.s32.totalorder %s323, 3
      %s325 = scalar_select %p324, %s323, 3
      %s326 = smul.addr %s325, 8
      %s327 = scalar_lea.vmem %s5, %s326
      // Predicated region
      $region41: #{gru_linear.1} parent=39 // pred_check
        %p328 = pneg %p149
      $region42: #{gru_linear.1} parent=39 // pred_check_branch
        %330 = sbr.rel (%p328) target = $region44
      $region43: #{gru_linear.1} parent=39 // pred_region
        %s331 = smul.u32 2, %s16
      $region44: #{gru_linear.1} parent=39 // pred_fallthru
        _
    $region40: #{gru_linear.1} parent=5 // pred_fallthru
      _
    %p332 = scmp.le.s32.totalorder 2, %s11
    // Predicated region
    $region45: #{gru_linear.1} parent=5 // pred_check
      %p333 = pneg %p332
    $region46: #{gru_linear.1} parent=5 // pred_check_branch
      %335 = sbr.rel (%p333) target = $region48
    $region47: #{gru_linear.1} parent=5 // pred_region
      %s336 = ssub.s32 %s11, 2
      // Predicated region
      $region49: #{gru_linear.1} parent=47 // pred_check
        %p337 = pneg %p155
      $region50: #{gru_linear.1} parent=47 // pred_check_branch
        %339 = sbr.rel (%p337) target = $region52
      $region51: #{gru_linear.1} parent=47 // pred_region
        %s340 = smul.u32 2, %s17
        %p341 = scmp.lt.s32.totalorder %s340, 3
        %s342 = scalar_select %p341, %s340, 3
        %s343 = smul.addr %s342, 8
        %s344 = scalar_lea.vmem %s5, %s343
      $region52: #{gru_linear.1} parent=47 // pred_fallthru
        _
    $region48: #{gru_linear.1} parent=5 // pred_fallthru
      _
  $region6: #{gru_linear.1} parent=0 // loop_footer
    %s15 = sadd.s32 1, %s11
  $region7: #{gru_linear.1} parent=0 // loop_footer_branch
    %10 = sbr.rel target = $region3
  $region8: #{gru_linear.1} parent=0 // loop_exit
    _

</llo_original>
